<compile_context>
chip_gen: v5e
topology: v5e:2x2
jax: 0.10.0
libtpu: 0.0.40
codegen_flags: <defaults>
</compile_context>

<pallas_src>
import math

import jax
import jax.numpy as jnp
from jax import lax
from jax.experimental import pallas as pl
from jax.experimental.pallas import tpu as pltpu

_LANE = 128
_SUB = 8


def _round_up(x, m):
    return -(-x // m) * m


def dice_and_bce_loss(pred, target, *, binary_targets=False, dma_dtype=None,
                      num_cores=2, max_tile_bytes=4 * 1024 * 1024,
                      sub_chunk_bytes=512 * 1024):
    """Dice + BCE loss over (B, ...) probability maps. Returns a scalar f32.

    binary_targets: enable the single-log BCE fast path (valid only for {0,1}
                    targets; exactly equal to the two-log path there).
    dma_dtype:      optionally cast inputs (e.g. jnp.bfloat16) before the DMA
                    to halve HBM traffic; accumulation is always float32.
    """
    B = pred.shape[0]
    N = int(math.prod(pred.shape[1:]))          # elements per sample (un-padded)
    smooth = 1.0

    xf = pred.reshape(B, N)
    tf = target.reshape(B, N)
    if dma_dtype is not None:
        xf = xf.astype(dma_dtype)
        tf = tf.astype(dma_dtype)

    itemsize = jnp.dtype(xf.dtype).itemsize
    granule = _SUB * max(1, 4 // itemsize)      # row granularity (sublane packing)
    chunk = _LANE * granule

    # Pad the flattened axis so each sample is a whole number of (granule, 128)
    # row groups.  Zero padding contributes exactly 0 to every partial sum.
    n_pad = (-N) % chunk
    if n_pad:
        xf = jnp.pad(xf, ((0, 0), (0, n_pad)))
        tf = jnp.pad(tf, ((0, 0), (0, n_pad)))
    R = (N + n_pad) // _LANE                    # 128-wide rows per sample

    # DMA tile: largest row-tile (multiple of granule) with per-input tile
    # <= max_tile_bytes, but never bigger than one core's fair share of rows.
    bytes_per_row = B * _LANE * itemsize
    tile_r = max(granule, (max_tile_bytes // bytes_per_row) // granule * granule)
    per_core_rows = _round_up(_round_up(R, num_cores) // num_cores, granule)
    tile_r = min(tile_r, per_core_rows)

    # Pad rows up to a multiple of tile_r * num_cores (more harmless zeros).
    r_pad = (-R) % (tile_r * num_cores)
    if r_pad:
        xf = jnp.pad(xf, ((0, 0), (0, r_pad * _LANE)))
        tf = jnp.pad(tf, ((0, 0), (0, r_pad * _LANE)))
        R += r_pad

    x3 = xf.reshape(B, R, _LANE)
    t3 = tf.reshape(B, R, _LANE)
    steps_per_core = R // (tile_r * num_cores)

    # Sub-chunk rows: keep each per-iteration f32 temporary ~= sub_chunk_bytes.
    sub_r = max(granule, (sub_chunk_bytes // (B * _LANE * 4)) // granule * granule)
    sub_r = min(sub_r, tile_r)
    while tile_r % sub_r:
        sub_r -= granule
    n_sub = tile_r // sub_r

    def kernel(x_ref, t_ref, inter_ref, sq_ref, ll_ref):
        r = pl.program_id(1)                    # reduction step within this core

        @pl.when(r == 0)
        def _init():
            inter_ref[...] = jnp.zeros_like(inter_ref)
            sq_ref[...] = jnp.zeros_like(sq_ref)
            ll_ref[...] = jnp.zeros_like(ll_ref)

        def body(i, carry):
            off = pl.multiple_of(i * sub_r, sub_r)
            x = x_ref[:, pl.ds(off, sub_r), :].astype(jnp.float32)   # (B, sub_r, 128)
            t = t_ref[:, pl.ds(off, sub_r), :].astype(jnp.float32)
            # Fold groups of 8 sublanes: the axis-1 reductions below are pure
            # whole-vreg VPU adds; the tiny cross-lane reduce runs once in the
            # JAX wrapper on the (num_cores, B, 8, 128) partials.
            xs = x.reshape(B, sub_r // _SUB, _SUB, _LANE)
            ts = t.reshape(B, sub_r // _SUB, _SUB, _LANE)

            s = xs + ts
            inter_ref[0] += jnp.sum(xs * ts, axis=1)
            sq_ref[0] += jnp.sum(s * s, axis=1)      # union = sq - 2*intersect later

            if binary_targets:
                # Single-log fast path ({0,1} targets). Padded x=0,t=0 -> log(1)=0.
                p = jnp.where(ts >= 0.5, xs, 1.0 - xs)
                ll = jnp.maximum(jnp.log(p), -100.0)
            else:
                # NOTE: the -100 clamp MUST precede the multiply so padded
                # x=0, t=0 gives 0 * (-100) = 0 instead of 0 * (-inf) = NaN.
                log_x = jnp.maximum(jnp.log(xs), -100.0)
                log_1mx = jnp.maximum(jnp.log(1.0 - xs), -100.0)
                ll = ts * log_x + (1.0 - ts) * log_1mx
            ll_ref[0] += jnp.sum(ll, axis=1)         # negated once in the wrapper
            return carry

        lax.fori_loop(0, n_sub, body, 0)

    total_elems = B * R * _LANE
    cost = pl.CostEstimate(
        flops=(10 if binary_targets else 12) * total_elems,
        transcendentals=(1 if binary_targets else 2) * total_elems,
        bytes_accessed=2 * total_elems * itemsize,
    )

    acc_shape = jax.ShapeDtypeStruct((num_cores, B, _SUB, _LANE), jnp.float32)
    acc_spec = pl.BlockSpec((1, B, _SUB, _LANE), lambda c, r: (c, 0, 0, 0))
    in_spec = pl.BlockSpec((B, tile_r, _LANE),
                           lambda c, r: (0, c * steps_per_core + r, 0))

    inter_p, sq_p, ll_p = pl.pallas_call(
        kernel,
        out_shape=(acc_shape, acc_shape, acc_shape),
        grid=(num_cores, steps_per_core),
        in_specs=[in_spec, in_spec],
        out_specs=(acc_spec, acc_spec, acc_spec),
        compiler_params=pltpu.CompilerParams(
            dimension_semantics=("parallel", "arbitrary"),
            vmem_limit_bytes=32 * 1024 * 1024,   # 2 in x 2 bufs x 4 MiB + small outs
        ),
        cost_estimate=cost,
    )(x3, t3)

    # Tiny finalize in XLA: combine per-core / per-bucket partials.
    intersect = jnp.sum(inter_p, axis=(0, 2, 3))       # (B,)
    sq = jnp.sum(sq_p, axis=(0, 2, 3))                 # (B,) sum of (x+t)^2
    union = sq - 2.0 * intersect                       # = sum(x^2) + sum(t^2)
    dice = jnp.mean(1.0 - (2.0 * intersect + smooth) / (union + smooth))
    bce = -jnp.sum(ll_p) / float(B * N)                # mean over ORIGINAL elements
    return dice + bce


def _reference(pred, target):
    # Pure-JAX reference matching the PyTorch module semantics.
    B = pred.shape[0]
    x = pred.reshape(B, -1).astype(jnp.float32)
    t = target.reshape(B, -1).astype(jnp.float32)
    intersect = jnp.sum(x * t, axis=1)
    union = jnp.sum(x * x, axis=1) + jnp.sum(t * t, axis=1)
    dice = jnp.mean(1.0 - (2.0 * intersect + 1.0) / (union + 1.0))
    log_x = jnp.maximum(jnp.log(x), -100.0)
    log_1mx = jnp.maximum(jnp.log(1.0 - x), -100.0)
    bce = jnp.mean(-(t * log_x + (1.0 - t) * log_1mx))
    return dice + bce


if __name__ == "__main__":
    key = jax.random.PRNGKey(0)
    k1, k2 = jax.random.split(key)

    B, C, H, W = 2, 4, 16, 16
    # Predictions: probabilities in (0, 1); targets: binary masks (0/1 floats).
    pred = jax.nn.sigmoid(jax.random.normal(k1, (B, C, H, W), dtype=jnp.float32))
    target = (jax.random.uniform(k2, (B, C, H, W)) > 0.5).astype(jnp.float32)

    ref = jax.block_until_ready(_reference(pred, target))

    # 1) Exact module semantics: soft-target two-log BCE, f32 DMA.
    loss = jax.block_until_ready(dice_and_bce_loss(pred, target))
    assert jnp.allclose(loss, ref, rtol=1e-5, atol=1e-5), (loss, ref)

    # 2) Binary-target single-log fast path (targets here are {0,1} masks).
    loss_bin = jax.block_until_ready(
        dice_and_bce_loss(pred, target, binary_targets=True))
    assert jnp.allclose(loss_bin, ref, rtol=1e-5, atol=1e-5), (loss_bin, ref)

    # 3) bf16 DMA path (halves HBM traffic on HBM-bound v5e/v6e); compare
    #    against the reference evaluated on the same bf16-rounded inputs.
    ref_bf16 = jax.block_until_ready(
        _reference(pred.astype(jnp.bfloat16).astype(jnp.float32),
                   target.astype(jnp.bfloat16).astype(jnp.float32)))
    loss_bf16 = jax.block_until_ready(
        dice_and_bce_loss(pred, target, binary_targets=True,
                          dma_dtype=jnp.bfloat16))
    assert jnp.allclose(loss_bf16, ref_bf16, rtol=1e-4, atol=1e-4), (loss_bf16, ref_bf16)

    print("KERNEL_OK")
</pallas_src>

<mosaic_0001>
module attributes {stable_mosaic.version = 11 : i64} {
  func.func @kernel(%arg0: i32, %arg1: i32, %arg2: memref<2x8x128xf32, #tpu.memory_space<vmem>>, %arg3: memref<2x8x128xf32, #tpu.memory_space<vmem>>, %arg4: memref<1x2x8x128xf32, #tpu.memory_space<vmem>>, %arg5: memref<1x2x8x128xf32, #tpu.memory_space<vmem>>, %arg6: memref<1x2x8x128xf32, #tpu.memory_space<vmem>>) attributes {dimension_semantics = [#tpu.dimension_semantics<parallel>, #tpu.dimension_semantics<arbitrary>], iteration_bounds = array<i64: 2, 1>, scalar_prefetch = 0 : i64, scratch_operands = 0 : i64, tpu.core_type = #tpu.core_type<tc>, window_params = [{transform_indices = @transform_0, window_bounds = array<i64: 2, 8, 128>}, {transform_indices = @transform_1, window_bounds = array<i64: 2, 8, 128>}, {transform_indices = @transform_2, window_bounds = array<i64: 1, 2, 8, 128>}, {transform_indices = @transform_3, window_bounds = array<i64: 1, 2, 8, 128>}, {transform_indices = @transform_4, window_bounds = array<i64: 1, 2, 8, 128>}]} {
    %c0_i32 = arith.constant 0 : i32
    %0 = arith.cmpi eq, %arg1, %c0_i32 : i32
    %1 = arith.extui %0 : i1 to i32
    %c0_i32_0 = arith.constant 0 : i32
    %2 = arith.cmpi ne, %1, %c0_i32_0 : i32
    scf.if %2 {
      %cst_35 = arith.constant 0.000000e+00 : f32
      %48 = vector.broadcast %cst_35 : f32 to vector<1x2x8x128xf32>
      %c0_36 = arith.constant 0 : index
      %c0_37 = arith.constant 0 : index
      %c0_38 = arith.constant 0 : index
      %c0_39 = arith.constant 0 : index
      %49 = vector.load %arg4[%c0_36, %c0_37, %c0_38, %c0_39] : memref<1x2x8x128xf32, #tpu.memory_space<vmem>>, vector<1x2x8x128xf32>
      tpu.vector_store %arg4[%c0_36, %c0_37, %c0_38, %c0_39], %48 {strides = array<i32>} : memref<1x2x8x128xf32, #tpu.memory_space<vmem>>, vector<1x2x8x128xf32>,
      %cst_40 = arith.constant 0.000000e+00 : f32
      %50 = vector.broadcast %cst_40 : f32 to vector<1x2x8x128xf32>
      %c0_41 = arith.constant 0 : index
      %c0_42 = arith.constant 0 : index
      %c0_43 = arith.constant 0 : index
      %c0_44 = arith.constant 0 : index
      %51 = vector.load %arg5[%c0_41, %c0_42, %c0_43, %c0_44] : memref<1x2x8x128xf32, #tpu.memory_space<vmem>>, vector<1x2x8x128xf32>
      tpu.vector_store %arg5[%c0_41, %c0_42, %c0_43, %c0_44], %50 {strides = array<i32>} : memref<1x2x8x128xf32, #tpu.memory_space<vmem>>, vector<1x2x8x128xf32>,
      %cst_45 = arith.constant 0.000000e+00 : f32
      %52 = vector.broadcast %cst_45 : f32 to vector<1x2x8x128xf32>
      %c0_46 = arith.constant 0 : index
      %c0_47 = arith.constant 0 : index
      %c0_48 = arith.constant 0 : index
      %c0_49 = arith.constant 0 : index
      %53 = vector.load %arg6[%c0_46, %c0_47, %c0_48, %c0_49] : memref<1x2x8x128xf32, #tpu.memory_space<vmem>>, vector<1x2x8x128xf32>
      tpu.vector_store %arg6[%c0_46, %c0_47, %c0_48, %c0_49], %52 {strides = array<i32>} : memref<1x2x8x128xf32, #tpu.memory_space<vmem>>, vector<1x2x8x128xf32>,
    } else {
    }
    %c0_i32_1 = arith.constant 0 : i32
    %c8_i32 = arith.constant 8 : i32
    %3 = arith.muli %c0_i32_1, %c8_i32 : i32
    %4 = tpu.assume_multiple %3, 8 : i32
    %c0 = arith.constant 0 : index
    %5 = arith.index_cast %4 : i32 to index
    %c0_2 = arith.constant 0 : index
    %6 = vector.load %arg2[%c0, %5, %c0_2] : memref<2x8x128xf32, #tpu.memory_space<vmem>>, vector<2x8x128xf32>
    %c0_3 = arith.constant 0 : index
    %7 = arith.index_cast %4 : i32 to index
    %c0_4 = arith.constant 0 : index
    %8 = vector.load %arg3[%c0_3, %7, %c0_4] : memref<2x8x128xf32, #tpu.memory_space<vmem>>, vector<2x8x128xf32>
    %9 = vector.shape_cast %6 : vector<2x8x128xf32> to vector<2x1x8x128xf32>
    %10 = vector.shape_cast %8 : vector<2x8x128xf32> to vector<2x1x8x128xf32>
    %11 = arith.addf %9, %10 : vector<2x1x8x128xf32>
    %c0_5 = arith.constant 0 : index
    %c0_6 = arith.constant 0 : index
    %c0_7 = arith.constant 0 : index
    %c0_8 = arith.constant 0 : index
    %12 = vector.load %arg4[%c0_5, %c0_6, %c0_7, %c0_8] : memref<1x2x8x128xf32, #tpu.memory_space<vmem>>, vector<1x2x8x128xf32>
    %13 = vector.shape_cast %12 : vector<1x2x8x128xf32> to vector<2x8x128xf32>
    %14 = arith.mulf %9, %10 : vector<2x1x8x128xf32>
    %cst = arith.constant dense<0.000000e+00> : vector<2x8x128xf32>
    %15 = vector.multi_reduction <add>, %14, %cst [1] : vector<2x1x8x128xf32> to vector<2x8x128xf32>
    %16 = arith.addf %13, %15 : vector<2x8x128xf32>
    %c0_9 = arith.constant 0 : index
    %c0_10 = arith.constant 0 : index
    %c0_11 = arith.constant 0 : index
    %c0_12 = arith.constant 0 : index
    %17 = vector.load %arg4[%c0_9, %c0_10, %c0_11, %c0_12] : memref<1x2x8x128xf32, #tpu.memory_space<vmem>>, vector<1x2x8x128xf32>
    %18 = vector.shape_cast %17 : vector<1x2x8x128xf32> to vector<2x8x128xf32>
    %19 = vector.shape_cast %16 : vector<2x8x128xf32> to vector<1x2x8x128xf32>
    tpu.vector_store %arg4[%c0_9, %c0_10, %c0_11, %c0_12], %19 {strides = array<i32>} : memref<1x2x8x128xf32, #tpu.memory_space<vmem>>, vector<1x2x8x128xf32>,
    %c0_13 = arith.constant 0 : index
    %c0_14 = arith.constant 0 : index
    %c0_15 = arith.constant 0 : index
    %c0_16 = arith.constant 0 : index
    %20 = vector.load %arg5[%c0_13, %c0_14, %c0_15, %c0_16] : memref<1x2x8x128xf32, #tpu.memory_space<vmem>>, vector<1x2x8x128xf32>
    %21 = vector.shape_cast %20 : vector<1x2x8x128xf32> to vector<2x8x128xf32>
    %22 = arith.mulf %11, %11 : vector<2x1x8x128xf32>
    %cst_17 = arith.constant dense<0.000000e+00> : vector<2x8x128xf32>
    %23 = vector.multi_reduction <add>, %22, %cst_17 [1] : vector<2x1x8x128xf32> to vector<2x8x128xf32>
    %24 = arith.addf %21, %23 : vector<2x8x128xf32>
    %c0_18 = arith.constant 0 : index
    %c0_19 = arith.constant 0 : index
    %c0_20 = arith.constant 0 : index
    %c0_21 = arith.constant 0 : index
    %25 = vector.load %arg5[%c0_18, %c0_19, %c0_20, %c0_21] : memref<1x2x8x128xf32, #tpu.memory_space<vmem>>, vector<1x2x8x128xf32>
    %26 = vector.shape_cast %25 : vector<1x2x8x128xf32> to vector<2x8x128xf32>
    %27 = vector.shape_cast %24 : vector<2x8x128xf32> to vector<1x2x8x128xf32>
    tpu.vector_store %arg5[%c0_18, %c0_19, %c0_20, %c0_21], %27 {strides = array<i32>} : memref<1x2x8x128xf32, #tpu.memory_space<vmem>>, vector<1x2x8x128xf32>,
    %28 = math.log %9 : vector<2x1x8x128xf32>
    %cst_22 = arith.constant -1.000000e+02 : f32
    %29 = vector.broadcast %cst_22 : f32 to vector<2x1x8x128xf32>
    %30 = arith.maximumf %28, %29 : vector<2x1x8x128xf32>
    %cst_23 = arith.constant 1.000000e+00 : f32
    %31 = vector.broadcast %cst_23 : f32 to vector<2x1x8x128xf32>
    %32 = arith.subf %31, %9 : vector<2x1x8x128xf32>
    %33 = math.log %32 : vector<2x1x8x128xf32>
    %cst_24 = arith.constant -1.000000e+02 : f32
    %34 = vector.broadcast %cst_24 : f32 to vector<2x1x8x128xf32>
    %35 = arith.maximumf %33, %34 : vector<2x1x8x128xf32>
    %36 = arith.mulf %10, %30 : vector<2x1x8x128xf32>
    %cst_25 = arith.constant 1.000000e+00 : f32
    %37 = vector.broadcast %cst_25 : f32 to vector<2x1x8x128xf32>
    %38 = arith.subf %37, %10 : vector<2x1x8x128xf32>
    %39 = arith.mulf %38, %35 : vector<2x1x8x128xf32>
    %40 = arith.addf %36, %39 : vector<2x1x8x128xf32>
    %c0_26 = arith.constant 0 : index
    %c0_27 = arith.constant 0 : index
    %c0_28 = arith.constant 0 : index
    %c0_29 = arith.constant 0 : index
    %41 = vector.load %arg6[%c0_26, %c0_27, %c0_28, %c0_29] : memref<1x2x8x128xf32, #tpu.memory_space<vmem>>, vector<1x2x8x128xf32>
    %42 = vector.shape_cast %41 : vector<1x2x8x128xf32> to vector<2x8x128xf32>
    %cst_30 = arith.constant dense<0.000000e+00> : vector<2x8x128xf32>
    %43 = vector.multi_reduction <add>, %40, %cst_30 [1] : vector<2x1x8x128xf32> to vector<2x8x128xf32>
    %44 = arith.addf %42, %43 : vector<2x8x128xf32>
    %c0_31 = arith.constant 0 : index
    %c0_32 = arith.constant 0 : index
    %c0_33 = arith.constant 0 : index
    %c0_34 = arith.constant 0 : index
    %45 = vector.load %arg6[%c0_31, %c0_32, %c0_33, %c0_34] : memref<1x2x8x128xf32, #tpu.memory_space<vmem>>, vector<1x2x8x128xf32>
    %46 = vector.shape_cast %45 : vector<1x2x8x128xf32> to vector<2x8x128xf32>
    %47 = vector.shape_cast %44 : vector<2x8x128xf32> to vector<1x2x8x128xf32>
    tpu.vector_store %arg6[%c0_31, %c0_32, %c0_33, %c0_34], %47 {strides = array<i32>} : memref<1x2x8x128xf32, #tpu.memory_space<vmem>>, vector<1x2x8x128xf32>,
    %c1_i32 = arith.constant 1 : i32
    return
  }
  func.func @transform_0(%arg0: i32, %arg1: i32) -> (i32, i32, i32) {
    %c1_i32 = arith.constant 1 : i32
    %0 = arith.muli %arg0, %c1_i32 : i32
    %1 = arith.addi %0, %arg1 : i32
    %c0_i32 = arith.constant 0 : i32
    %c0_i32_0 = arith.constant 0 : i32
    %c0_i32_1 = arith.constant 0 : i32
    return %c0_i32, %1, %c0_i32_0 : i32, i32, i32
  }
  func.func @transform_1(%arg0: i32, %arg1: i32) -> (i32, i32, i32) {
    %c1_i32 = arith.constant 1 : i32
    %0 = arith.muli %arg0, %c1_i32 : i32
    %1 = arith.addi %0, %arg1 : i32
    %c0_i32 = arith.constant 0 : i32
    %c0_i32_0 = arith.constant 0 : i32
    %c0_i32_1 = arith.constant 0 : i32
    return %c0_i32, %1, %c0_i32_0 : i32, i32, i32
  }
  func.func @transform_2(%arg0: i32, %arg1: i32) -> (i32, i32, i32, i32) {
    %c0_i32 = arith.constant 0 : i32
    %c0_i32_0 = arith.constant 0 : i32
    %c0_i32_1 = arith.constant 0 : i32
    %c0_i32_2 = arith.constant 0 : i32
    return %arg0, %c0_i32, %c0_i32_0, %c0_i32_1 : i32, i32, i32, i32
  }
  func.func @transform_3(%arg0: i32, %arg1: i32) -> (i32, i32, i32, i32) {
    %c0_i32 = arith.constant 0 : i32
    %c0_i32_0 = arith.constant 0 : i32
    %c0_i32_1 = arith.constant 0 : i32
    %c0_i32_2 = arith.constant 0 : i32
    return %arg0, %c0_i32, %c0_i32_0, %c0_i32_1 : i32, i32, i32, i32
  }
  func.func @transform_4(%arg0: i32, %arg1: i32) -> (i32, i32, i32, i32) {
    %c0_i32 = arith.constant 0 : i32
    %c0_i32_0 = arith.constant 0 : i32
    %c0_i32_1 = arith.constant 0 : i32
    %c0_i32_2 = arith.constant 0 : i32
    return %arg0, %c0_i32, %c0_i32_0, %c0_i32_1 : i32, i32, i32, i32
  }
}

</mosaic_0001>

<llo_original>
// kernel: tpu_custom_call.1
$region0: #{tpu_custom_call.1}
  #allocation0 [shape = 'u32[]', space=smem, size = 0x4, offset = 0x4, fixed_abs, tag = 'smem constant byte address 0x4 - core index']
  #allocation1 [shape = 'u32[72,128]{1,0:T(1,128)}', space=vmem, size = 0x9000, scoped, tag = 'internal scratch']
  %s0 = inlined_call_operand.hbm [shape: f32[2,16,128], index: 0, kind: input, shape index: {}]
  %s1 = inlined_call_operand.hbm [shape: f32[2,16,128], index: 1, kind: input, shape index: {}]
  %s2 = inlined_call_operand.hbm [shape: f32[2,2,8,128], index: 2, kind: output, shape index: {0}]
  %s3 = inlined_call_operand.hbm [shape: f32[2,2,8,128], index: 3, kind: output, shape index: {1}]
  %s4 = inlined_call_operand.hbm [shape: f32[2,2,8,128], index: 4, kind: output, shape index: {2}]
  %5 = xla_tuple %s2, %s3, %s4
  %s6 = sld [smem:[#allocation0]]
  $region69: #{tpu_custom_call.1} parent=0
    _
  %s8 = ssub.s32 1, %s6
  %s9 = scalar_select 0, %s8, %s6
  $region1: #{tpu_custom_call.1} parent=0
    #allocation2 [shape = 'u8[16384]{0}', space=vmem, size = 0x4000, scoped, tag = 'input window, operand 0']
    #allocation3 [shape = 's32[2]{0}', space=sflag, size = 0x8, scoped, tag = 'scoped memory for tpu_custom_call.1']
    #allocation4 [shape = 's32[2]{0}', space=sflag, size = 0x8, scoped, tag = 'scoped memory for tpu_custom_call.1']
    #allocation5 [shape = 'u8[16384]{0}', space=vmem, size = 0x4000, scoped, tag = 'input window, operand 1']
    #allocation6 [shape = 's32[2]{0}', space=sflag, size = 0x8, scoped, tag = 'scoped memory for tpu_custom_call.1']
    #allocation7 [shape = 'u8[16384]{0}', space=vmem, size = 0x4000, scoped, tag = 'output window, operand 0']
    #allocation8 [shape = 'u8[16384]{0}', space=vmem, size = 0x4000, scoped, tag = 'output window, operand 1']
    #allocation9 [shape = 's32[2]{0}', space=sflag, size = 0x8, scoped, tag = 'scoped memory for tpu_custom_call.1']
    #allocation10 [shape = 'u8[16384]{0}', space=vmem, size = 0x4000, scoped, tag = 'output window, operand 2']
    %10 = vsyncpa [#allocation3], 0
    %s11 = scalar_lea.sflag [#allocation3], 1
    %12 = vsyncpa %s11, 0
    %13 = vsyncpa [#allocation6], 0
    %s14 = scalar_lea.sflag [#allocation6], 1
    %15 = vsyncpa %s14, 0
    %16 = vsyncpa [#allocation4], 0
    %s17 = scalar_lea.sflag [#allocation4], 1
    %18 = vsyncpa %s17, 0
    %19 = vsyncpa [#allocation9], 0
    %s20 = scalar_lea.sflag [#allocation9], 1
    %21 = vsyncpa %s20, 0
    loop: start=0, step=1, limit=4
    $region2: #{tpu_custom_call.1} parent=1 // loop_pre_header
      _
    $region3: #{tpu_custom_call.1} parent=1 // loop_header
      %s23 = sphi 0, %s27
      %p24 = scmp.ge.s32.totalorder %s23, 4
      %s30 = sphi 0, %s42
      %s31 = sphi 0, %s38
      %s32 = sphi 0, %s30
      %s33 = sphi 0, %s31
      %s34 = sphi 0, %s32
      %s35 = sphi 0, %s33
      %s47 = sphi 0, %s49
      %s50 = sphi 0, %s47
      %s51 = sphi 0, %s50
      %s67 = sphi 0, %s51
      %s75 = sphi 0, %s77
      %s78 = sphi 0, %s75
      %s79 = sphi 0, %s78
      %s95 = sphi 0, %s79
      %s101 = sphi 0, %s103
      %s104 = sphi 0, %s101
      %s105 = sphi 0, %s104
      %s121 = sphi 0, %s105
      %s127 = sphi 0, %s129
      %s130 = sphi 0, %s127
      %s131 = sphi 0, %s130
      %s147 = sphi 0, %s131
      %s153 = sphi 0, %s155
      %s156 = sphi 0, %s153
      %s157 = sphi 0, %s156
      %s173 = sphi 0, %s157
    $region4: #{tpu_custom_call.1} parent=1 // loop_header_branch
      %26 = sbr.rel (%p24) target = $region8
    $region5: #{tpu_custom_call.1} parent=1 // loop_body
      %s28 = ssub.s32 %s23, 1
      %s29 = ssub.s32 %s23, 2
      %s36 = sadd.s32 1, %s31
      %p37 = scmp.ge.s32.totalorder %s36, 1
      %s38 = scalar_select %p37, 0, %s36
      %s39 = sadd.s32 1, %s30
      %s40 = scalar_select %p37, %s39, %s30
      %p41 = scmp.ge.s32.totalorder %s40, 2
      %s42 = scalar_select %p41, 0, %s40
      %s43 = sadd.s32 %s30, %s31
      %s44 = sadd.s32 %s42, %s38
      %s45 = ssub.s32 %s43, %s44
      %p46 = scmp.eq.s32.totalorder %s45, 0
      %s48 = sadd.s32 %s47, 1
      %s49 = scalar_select %p46, %s47, %s48
      %p52 = pneg %p46
      %p53 = scmp.eq.s32.totalorder %s23, 1
      %p54 = por %p52, %p53
      %p55 = scmp.ne.s32.totalorder %s47, %s50
      %p56 = scmp.eq.s32.totalorder %s23, 0
      %p57 = por %p55, %p56
      %p58 = scmp.ne.s32.totalorder %s47, %s50
      %p59 = scmp.eq.s32.totalorder %s28, 1
      %p60 = por %p58, %p59
      %p61 = scmp.ne.s32.totalorder %s50, %s51
      %p62 = scmp.eq.s32.totalorder %s28, 0
      %p63 = por %p61, %p62
      %p64 = scmp.ne.s32.totalorder %s50, %s51
      %p65 = scmp.eq.s32.totalorder %s29, 1
      %p66 = por %p64, %p65
      %p68 = scmp.ne.s32.totalorder %s51, %s67
      %p69 = scmp.eq.s32.totalorder %s29, 0
      %p70 = por %p68, %p69
      %s71 = sadd.s32 %s30, %s31
      %s72 = sadd.s32 %s42, %s38
      %s73 = ssub.s32 %s71, %s72
      %p74 = scmp.eq.s32.totalorder %s73, 0
      %s76 = sadd.s32 %s75, 1
      %s77 = scalar_select %p74, %s75, %s76
      %p80 = pneg %p74
      %p81 = scmp.eq.s32.totalorder %s23, 1
      %p82 = por %p80, %p81
      %p83 = scmp.ne.s32.totalorder %s75, %s78
      %p84 = scmp.eq.s32.totalorder %s23, 0
      %p85 = por %p83, %p84
      %p86 = scmp.ne.s32.totalorder %s75, %s78
      %p87 = scmp.eq.s32.totalorder %s28, 1
      %p88 = por %p86, %p87
      %p89 = scmp.ne.s32.totalorder %s78, %s79
      %p90 = scmp.eq.s32.totalorder %s28, 0
      %p91 = por %p89, %p90
      %p92 = scmp.ne.s32.totalorder %s78, %s79
      %p93 = scmp.eq.s32.totalorder %s29, 1
      %p94 = por %p92, %p93
      %p96 = scmp.ne.s32.totalorder %s79, %s95
      %p97 = scmp.eq.s32.totalorder %s29, 0
      %p98 = por %p96, %p97
      %s99 = ssub.s32 %s30, %s42
      %p100 = scmp.eq.s32.totalorder %s99, 0
      %s102 = sadd.s32 %s101, 1
      %s103 = scalar_select %p100, %s101, %s102
      %p106 = pneg %p100
      %p107 = scmp.eq.s32.totalorder %s23, 1
      %p108 = por %p106, %p107
      %p109 = scmp.ne.s32.totalorder %s101, %s104
      %p110 = scmp.eq.s32.totalorder %s23, 0
      %p111 = por %p109, %p110
      %p112 = scmp.ne.s32.totalorder %s101, %s104
      %p113 = scmp.eq.s32.totalorder %s28, 1
      %p114 = por %p112, %p113
      %p115 = scmp.ne.s32.totalorder %s104, %s105
      %p116 = scmp.eq.s32.totalorder %s28, 0
      %p117 = por %p115, %p116
      %p118 = scmp.ne.s32.totalorder %s104, %s105
      %p119 = scmp.eq.s32.totalorder %s29, 1
      %p120 = por %p118, %p119
      %p122 = scmp.ne.s32.totalorder %s105, %s121
      %p123 = scmp.eq.s32.totalorder %s29, 0
      %p124 = por %p122, %p123
      %s125 = ssub.s32 %s30, %s42
      %p126 = scmp.eq.s32.totalorder %s125, 0
      %s128 = sadd.s32 %s127, 1
      %s129 = scalar_select %p126, %s127, %s128
      %p132 = pneg %p126
      %p133 = scmp.eq.s32.totalorder %s23, 1
      %p134 = por %p132, %p133
      %p135 = scmp.ne.s32.totalorder %s127, %s130
      %p136 = scmp.eq.s32.totalorder %s23, 0
      %p137 = por %p135, %p136
      %p138 = scmp.ne.s32.totalorder %s127, %s130
      %p139 = scmp.eq.s32.totalorder %s28, 1
      %p140 = por %p138, %p139
      %p141 = scmp.ne.s32.totalorder %s130, %s131
      %p142 = scmp.eq.s32.totalorder %s28, 0
      %p143 = por %p141, %p142
      %p144 = scmp.ne.s32.totalorder %s130, %s131
      %p145 = scmp.eq.s32.totalorder %s29, 1
      %p146 = por %p144, %p145
      %p148 = scmp.ne.s32.totalorder %s131, %s147
      %p149 = scmp.eq.s32.totalorder %s29, 0
      %p150 = por %p148, %p149
      %s151 = ssub.s32 %s30, %s42
      %p152 = scmp.eq.s32.totalorder %s151, 0
      %s154 = sadd.s32 %s153, 1
      %s155 = scalar_select %p152, %s153, %s154
      %p158 = pneg %p152
      %p159 = scmp.eq.s32.totalorder %s23, 1
      %p160 = por %p158, %p159
      %p161 = scmp.ne.s32.totalorder %s153, %s156
      %p162 = scmp.eq.s32.totalorder %s23, 0
      %p163 = por %p161, %p162
      %p164 = scmp.ne.s32.totalorder %s153, %s156
      %p165 = scmp.eq.s32.totalorder %s28, 1
      %p166 = por %p164, %p165
      %p167 = scmp.ne.s32.totalorder %s156, %s157
      %p168 = scmp.eq.s32.totalorder %s28, 0
      %p169 = por %p167, %p168
      %p170 = scmp.ne.s32.totalorder %s156, %s157
      %p171 = scmp.eq.s32.totalorder %s29, 1
      %p172 = por %p170, %p171
      %p174 = scmp.ne.s32.totalorder %s157, %s173
      %p175 = scmp.eq.s32.totalorder %s29, 0
      %p176 = por %p174, %p175
      %p177 = scmp.le.s32.totalorder 1, %s23
      %p178 = scmp.lt.s32.totalorder %s23, 3
      %p179 = pnand %p177, %p178
      %p180 = pneg %p179
      // Predicated region
      $region9: #{tpu_custom_call.1} parent=5 // pred_check
        _
      $region10: #{tpu_custom_call.1} parent=5 // pred_check_branch
        %182 = sbr.rel (%p179) target = $region12
      $region11: #{tpu_custom_call.1} parent=5 // pred_region
        %s183 = ssub.s32 %s23, 1
      $region12: #{tpu_custom_call.1} parent=5 // pred_fallthru
        _
      %p184 = scmp.lt.s32.totalorder %s23, 2
      // Predicated region
      $region13: #{tpu_custom_call.1} parent=5 // pred_check
        %p185 = pneg %p184
      $region14: #{tpu_custom_call.1} parent=5 // pred_check_branch
        %187 = sbr.rel (%p185) target = $region16
      $region15: #{tpu_custom_call.1} parent=5 // pred_region
        // Predicated region
        $region17: #{tpu_custom_call.1} parent=15 // pred_check
          %p188 = pneg %p57
        $region18: #{tpu_custom_call.1} parent=15 // pred_check_branch
          %190 = sbr.rel (%p188) target = $region20
        $region19: #{tpu_custom_call.1} parent=15 // pred_region
          %s191 = sand.u32 %s47, 1
          %s192 = scalar_lea.sflag [#allocation3], %s191
          %s193 = sand.u32 %s47, 1
          %s194 = smul.addr %s193, 16
          %s195 = scalar_lea.vmem [#allocation2], %s194
          %s196 = sadd.s32 %s30, %s31
          %198 = vsyncadd %s192, 0
          %s199 = smul.addr %s196, 8
          %s200 = scalar_lea.hbm %s0, %s199
          %s201 = sshll.u32 %s200, 4
          %s202 = int_to_ptr.hbm [resolvable:$true] %s201
          %s203 = sshll.u32 %s195, 4
          %s204 = int_to_ptr.vmem [resolvable:$true] %s203
          %209 = dma.hbm_to_vmem [thread:$0]  %s202, 256, %s204, %s192, 256, 128, 8
        $region20: #{tpu_custom_call.1} parent=15 // pred_fallthru
          _
        // Predicated region
        $region21: #{tpu_custom_call.1} parent=15 // pred_check
          %p210 = pneg %p85
        $region22: #{tpu_custom_call.1} parent=15 // pred_check_branch
          %212 = sbr.rel (%p210) target = $region24
        $region23: #{tpu_custom_call.1} parent=15 // pred_region
          %s213 = sand.u32 %s75, 1
          %s214 = scalar_lea.sflag [#allocation6], %s213
          %s215 = sand.u32 %s75, 1
          %s216 = smul.addr %s215, 16
          %s217 = scalar_lea.vmem [#allocation5], %s216
          %s218 = sadd.s32 %s30, %s31
          %220 = vsyncadd %s214, 0
          %s221 = smul.addr %s218, 8
          %s222 = scalar_lea.hbm %s1, %s221
          %s223 = sshll.u32 %s222, 4
          %s224 = int_to_ptr.hbm [resolvable:$true] %s223
          %s225 = sshll.u32 %s217, 4
          %s226 = int_to_ptr.vmem [resolvable:$true] %s225
          %231 = dma.hbm_to_vmem [thread:$0]  %s224, 256, %s226, %s214, 256, 128, 8
        $region24: #{tpu_custom_call.1} parent=15 // pred_fallthru
          _
      $region16: #{tpu_custom_call.1} parent=5 // pred_fallthru
        _
      %p232 = scmp.le.s32.totalorder 1, %s23
      %p233 = scmp.lt.s32.totalorder %s23, 3
      %p234 = pnand %p232, %p233
      %p235 = pneg %p234
      // Predicated region
      $region25: #{tpu_custom_call.1} parent=5 // pred_check
        _
      $region26: #{tpu_custom_call.1} parent=5 // pred_check_branch
        %237 = sbr.rel (%p234) target = $region28
      $region27: #{tpu_custom_call.1} parent=5 // pred_region
        %s238 = ssub.s32 %s23, 1
        %s239 = sand.u32 %s50, 1
        %s240 = scalar_lea.sflag [#allocation3], %s239
        %s241 = sand.u32 %s50, 1
        %s242 = smul.addr %s241, 16
        %s243 = scalar_lea.vmem [#allocation2], %s242
        // Predicated region
        $region29: #{tpu_custom_call.1} parent=27 // pred_check
          %p244 = pneg %p63
        $region30: #{tpu_custom_call.1} parent=27 // pred_check_branch
          %246 = sbr.rel (%p244) target = $region32
        $region31: #{tpu_custom_call.1} parent=27 // pred_region
          %248 = dma.done %s240, 256
        $region32: #{tpu_custom_call.1} parent=27 // pred_fallthru
          _
        %s249 = sand.u32 %s78, 1
        %s250 = scalar_lea.sflag [#allocation6], %s249
        %s251 = sand.u32 %s78, 1
        %s252 = smul.addr %s251, 16
        %s253 = scalar_lea.vmem [#allocation5], %s252
        // Predicated region
        $region33: #{tpu_custom_call.1} parent=27 // pred_check
          %p254 = pneg %p91
        $region34: #{tpu_custom_call.1} parent=27 // pred_check_branch
          %256 = sbr.rel (%p254) target = $region36
        $region35: #{tpu_custom_call.1} parent=27 // pred_region
          %258 = dma.done %s250, 256
        $region36: #{tpu_custom_call.1} parent=27 // pred_fallthru
          _
        %s259 = sand.u32 %s50, 1
        %s260 = scalar_lea.sflag [#allocation3], %s259
        %s261 = sand.u32 %s50, 1
        %s262 = smul.addr %s261, 16
        %s263 = scalar_lea.vmem [#allocation2], %s262
        %p264 = pneg %p63
        %p265 = pneg %p60
        %s266 = sand.u32 %s78, 1
        %s267 = scalar_lea.sflag [#allocation6], %s266
        %s268 = sand.u32 %s78, 1
        %s269 = smul.addr %s268, 16
        %s270 = scalar_lea.vmem [#allocation5], %s269
        %p271 = pneg %p91
        %p272 = pneg %p88
        %p273 = pneg %p117
        %p274 = pneg %p114
        %s275 = sand.u32 %s104, 1
        %s276 = scalar_lea.sflag [#allocation4], %s275
        %s277 = sand.u32 %s104, 1
        %s278 = smul.addr %s277, 16
        %s279 = scalar_lea.vmem [#allocation7], %s278
        %p280 = pneg %p143
        %p281 = pneg %p140
        %s282 = sand.u32 %s28, 1
        %s283 = scalar_lea.sflag [#allocation9], %s282
        %s284 = sand.u32 %s130, 1
        %s285 = smul.addr %s284, 16
        %s286 = scalar_lea.vmem [#allocation8], %s285
        %p287 = pneg %p169
        %p288 = pneg %p166
        %s289 = sand.u32 %s28, 1
        %s290 = scalar_lea.sflag [#allocation9], %s289
        %s291 = sand.u32 %s156, 1
        %s292 = smul.addr %s291, 16
        %s293 = scalar_lea.vmem [#allocation10], %s292
        %s294 = sadd.s32 %s32, %s33
        %s295 = sadd.s32 %s32, %s33
        %p296 = scmp.eq.s32.totalorder %s33, 0
        // Predicated region
        $region37: #{tpu_custom_call.1} parent=27 // pred_check
          %p297 = pneg %p296
        $region38: #{tpu_custom_call.1} parent=27 // pred_check_branch
          %299 = sbr.rel (%p297) target = $region40
        $region39: #{tpu_custom_call.1} parent=27 // pred_region
          %300 = vst [vmem:[%s279] sm:$0xff] 0.0
          %301 = vst [vmem:[%s279 + $0x8] sm:$0xff] 0.0
          %302 = vst [vmem:[%s286] sm:$0xff] 0.0
          %303 = vst [vmem:[%s286 + $0x8] sm:$0xff] 0.0
          %304 = vst [vmem:[%s293] sm:$0xff] 0.0
          %305 = vst [vmem:[%s293 + $0x8] sm:$0xff] 0.0
        $region40: #{tpu_custom_call.1} parent=27 // pred_fallthru
          _
        %v306 = vld [vmem:[%s243] sm:$0xff]
        %v307 = vld [vmem:[%s243 + $0x8] sm:$0xff]
        %v308 = vld [vmem:[%s253] sm:$0xff]
        %v309 = vld [vmem:[%s253 + $0x8] sm:$0xff]
        %v310 = vadd.f32 %v306, %v308
        %v311 = vadd.f32 %v307, %v309
        %v312 = vld [vmem:[%s279] sm:$0xff]
        %v313 = vld [vmem:[%s279 + $0x8] sm:$0xff]
        %v314 = vmul.f32 %v306, %v308
        %v315 = vmul.f32 %v307, %v309
        %v316 = vadd.f32 %v314, 0.0
        %v317 = vadd.f32 %v315, 0.0
        %v318 = vadd.f32 %v312, %v316
        %v319 = vadd.f32 %v313, %v317
        %320 = vst [vmem:[%s279] sm:$0xff] %v318
        %321 = vst [vmem:[%s279 + $0x8] sm:$0xff] %v319
        %v322 = vld [vmem:[%s286] sm:$0xff]
        %v323 = vld [vmem:[%s286 + $0x8] sm:$0xff]
        %v324 = vmul.f32 %v310, %v310
        %v325 = vmul.f32 %v311, %v311
        %v326 = vadd.f32 %v324, 0.0
        %v327 = vadd.f32 %v325, 0.0
        %v328 = vadd.f32 %v322, %v326
        %v329 = vadd.f32 %v323, %v327
        %330 = vst [vmem:[%s286] sm:$0xff] %v328
        %331 = vst [vmem:[%s286 + $0x8] sm:$0xff] %v329
        %v332 = vlog2.pop %v306
        %v333 = vmul.f32 %v332, 0.6931472
        %v334 = vlog2.pop %v307
        %v335 = vmul.f32 %v334, 0.6931472
        %v336 = vmax.f32 %v333, -100.0
        %v337 = vmax.f32 %v335, -100.0
        %v338 = vsub.f32 1.0, %v306
        %v339 = vsub.f32 1.0, %v307
        %v340 = vlog2.pop %v338
        %v341 = vmul.f32 %v340, 0.6931472
        %v342 = vlog2.pop %v339
        %v343 = vmul.f32 %v342, 0.6931472
        %v344 = vmax.f32 %v341, -100.0
        %v345 = vmax.f32 %v343, -100.0
        %v346 = vmul.f32 %v308, %v336
        %v347 = vmul.f32 %v309, %v337
        %v348 = vsub.f32 1.0, %v308
        %v349 = vsub.f32 1.0, %v309
        %v350 = vmul.f32 %v348, %v344
        %v351 = vmul.f32 %v349, %v345
        %v352 = vadd.f32 %v346, %v350
        %v353 = vadd.f32 %v347, %v351
        %v354 = vld [vmem:[%s293] sm:$0xff]
        %v355 = vld [vmem:[%s293 + $0x8] sm:$0xff]
        %v356 = vadd.f32 %v352, 0.0
        %v357 = vadd.f32 %v353, 0.0
        %v358 = vadd.f32 %v354, %v356
        %v359 = vadd.f32 %v355, %v357
        %360 = vst [vmem:[%s293] sm:$0xff] %v358
        %361 = vst [vmem:[%s293 + $0x8] sm:$0xff] %v359
        %s362 = sand.u32 %s104, 1
        %s363 = scalar_lea.sflag [#allocation4], %s362
        %s364 = sand.u32 %s104, 1
        %s365 = smul.addr %s364, 16
        %s366 = scalar_lea.vmem [#allocation7], %s365
        %s367 = sand.u32 %s28, 1
        %s368 = scalar_lea.sflag [#allocation9], %s367
        %s369 = sand.u32 %s130, 1
        %s370 = smul.addr %s369, 16
        %s371 = scalar_lea.vmem [#allocation8], %s370
        %s372 = sand.u32 %s28, 1
        %s373 = scalar_lea.sflag [#allocation9], %s372
        %s374 = sand.u32 %s156, 1
        %s375 = smul.addr %s374, 16
        %s376 = scalar_lea.vmem [#allocation10], %s375
        // Predicated region
        $region41: #{tpu_custom_call.1} parent=27 // pred_check
          %p377 = pneg %p114
        $region42: #{tpu_custom_call.1} parent=27 // pred_check_branch
          %379 = sbr.rel (%p377) target = $region44
        $region43: #{tpu_custom_call.1} parent=27 // pred_region
          %381 = vsyncadd %s363, 0
          %s382 = smul.addr %s32, 2
          %s383 = smul.addr %s382, 8
          %s384 = scalar_lea.hbm %s2, %s383
          %s385 = sshll.u32 %s366, 4
          %s386 = int_to_ptr.vmem [resolvable:$true] %s385
          %s387 = sshll.u32 %s384, 4
          %s388 = int_to_ptr.hbm [resolvable:$true] %s387
          %393 = dma.vmem_to_hbm [thread:$0]  %s386, 256, %s388, %s363, 128, 128, 8
        $region44: #{tpu_custom_call.1} parent=27 // pred_fallthru
          _
        // Predicated region
        $region45: #{tpu_custom_call.1} parent=27 // pred_check
          %p394 = pneg %p140
        $region46: #{tpu_custom_call.1} parent=27 // pred_check_branch
          %396 = sbr.rel (%p394) target = $region48
        $region47: #{tpu_custom_call.1} parent=27 // pred_region
          %398 = vsyncadd %s368, 0
          %s399 = smul.addr %s32, 2
          %s400 = smul.addr %s399, 8
          %s401 = scalar_lea.hbm %s3, %s400
          %s402 = sshll.u32 %s371, 4
          %s403 = int_to_ptr.vmem [resolvable:$true] %s402
          %s404 = sshll.u32 %s401, 4
          %s405 = int_to_ptr.hbm [resolvable:$true] %s404
          %410 = dma.vmem_to_hbm [thread:$0]  %s403, 256, %s405, %s368, 128, 128, 8
        $region48: #{tpu_custom_call.1} parent=27 // pred_fallthru
          _
        // Predicated region
        $region49: #{tpu_custom_call.1} parent=27 // pred_check
          %p411 = pneg %p166
        $region50: #{tpu_custom_call.1} parent=27 // pred_check_branch
          %413 = sbr.rel (%p411) target = $region52
        $region51: #{tpu_custom_call.1} parent=27 // pred_region
          %415 = vsyncadd %s373, 0
          %s416 = smul.addr %s32, 2
          %s417 = smul.addr %s416, 8
          %s418 = scalar_lea.hbm %s4, %s417
          %s419 = sshll.u32 %s376, 4
          %s420 = int_to_ptr.vmem [resolvable:$true] %s419
          %s421 = sshll.u32 %s418, 4
          %s422 = int_to_ptr.hbm [resolvable:$true] %s421
          %427 = dma.vmem_to_hbm [thread:$0]  %s420, 256, %s422, %s373, 128, 128, 8
        $region52: #{tpu_custom_call.1} parent=27 // pred_fallthru
          _
      $region28: #{tpu_custom_call.1} parent=5 // pred_fallthru
        _
      %p428 = scmp.le.s32.totalorder 2, %s23
      // Predicated region
      $region53: #{tpu_custom_call.1} parent=5 // pred_check
        %p429 = pneg %p428
      $region54: #{tpu_custom_call.1} parent=5 // pred_check_branch
        %431 = sbr.rel (%p429) target = $region56
      $region55: #{tpu_custom_call.1} parent=5 // pred_region
        %s432 = ssub.s32 %s23, 2
        // Predicated region
        $region57: #{tpu_custom_call.1} parent=55 // pred_check
          %p433 = pneg %p120
        $region58: #{tpu_custom_call.1} parent=55 // pred_check_branch
          %435 = sbr.rel (%p433) target = $region60
        $region59: #{tpu_custom_call.1} parent=55 // pred_region
          %s436 = sand.u32 %s105, 1
          %s437 = scalar_lea.sflag [#allocation4], %s436
          %s438 = sand.u32 %s105, 1
          %s439 = smul.addr %s438, 16
          %s440 = scalar_lea.vmem [#allocation7], %s439
          %442 = dma.done %s437, 256
        $region60: #{tpu_custom_call.1} parent=55 // pred_fallthru
          _
        // Predicated region
        $region61: #{tpu_custom_call.1} parent=55 // pred_check
          %p443 = pneg %p146
        $region62: #{tpu_custom_call.1} parent=55 // pred_check_branch
          %445 = sbr.rel (%p443) target = $region64
        $region63: #{tpu_custom_call.1} parent=55 // pred_region
          %s446 = sand.u32 %s29, 1
          %s447 = scalar_lea.sflag [#allocation9], %s446
          %s448 = sand.u32 %s131, 1
          %s449 = smul.addr %s448, 16
          %s450 = scalar_lea.vmem [#allocation8], %s449
          %452 = dma.done %s447, 256
        $region64: #{tpu_custom_call.1} parent=55 // pred_fallthru
          _
        // Predicated region
        $region65: #{tpu_custom_call.1} parent=55 // pred_check
          %p453 = pneg %p172
        $region66: #{tpu_custom_call.1} parent=55 // pred_check_branch
          %455 = sbr.rel (%p453) target = $region68
        $region67: #{tpu_custom_call.1} parent=55 // pred_region
          %s456 = sand.u32 %s29, 1
          %s457 = scalar_lea.sflag [#allocation9], %s456
          %s458 = sand.u32 %s157, 1
          %s459 = smul.addr %s458, 16
          %s460 = scalar_lea.vmem [#allocation10], %s459
          %462 = dma.done %s457, 256
        $region68: #{tpu_custom_call.1} parent=55 // pred_fallthru
          _
      $region56: #{tpu_custom_call.1} parent=5 // pred_fallthru
        _
    $region6: #{tpu_custom_call.1} parent=1 // loop_footer
      %s27 = sadd.s32 1, %s23
    $region7: #{tpu_custom_call.1} parent=1 // loop_footer_branch
      %22 = sbr.rel target = $region3
    $region8: #{tpu_custom_call.1} parent=1 // loop_exit
      _
    %463 = vsyncpa [#allocation3], 1
    %s464 = scalar_lea.sflag [#allocation3], 1
    %465 = vsyncpa %s464, 1
    %466 = vsyncpa [#allocation6], 1
    %s467 = scalar_lea.sflag [#allocation6], 1
    %468 = vsyncpa %s467, 1
    %469 = vsyncpa [#allocation4], 1
    %s470 = scalar_lea.sflag [#allocation4], 1
    %471 = vsyncpa %s470, 1
    %472 = vsyncpa [#allocation9], 1
    %s473 = scalar_lea.sflag [#allocation9], 1
    %474 = vsyncpa %s473, 1

</llo_original>
